<compile_context>
chip_gen: v7x
topology: tpu7x:2x2x1
jax: 0.10.0
libtpu: 0.0.40
codegen_flags: <defaults>
</compile_context>

<pallas_src>
import jax
import jax.numpy as jnp
from jax.experimental import pallas as pl
from jax.experimental.pallas import tpu as pltpu


def linear_kernel(x_ref, wb_ref, o_ref):
    # x_ref : (B, IN)
    # wb_ref: (IN+1, OUT) -- rows 0..IN-1 = W.T, row IN = bias (packed at init)
    # o_ref : (B, OUT)
    in_dim = x_ref.shape[1]
    wb = wb_ref[...]                    # single sub-vreg tile, one load
    w = wb[:in_dim, :]                  # (IN, OUT) == W.T    (static slice)
    b = wb[in_dim:in_dim + 1, :]        # (1, OUT)            (static slice)
    y = jnp.dot(x_ref[...], w, preferred_element_type=jnp.float32)  # MXU
    o_ref[...] = (y + b).astype(o_ref.dtype)                        # VPU add


def pack_linear_params(weight, bias):
    """One-time (init-time) repack of PyTorch-layout Linear parameters.

    weight: (OUT, IN) PyTorch nn.Linear layout; bias: (OUT,).
    Returns a single (IN+1, OUT) operand: rows 0..IN-1 are W.T, row IN is b.
    Do this ONCE when parameters are created/loaded, not per forward call.
    """
    out_dim, in_dim = weight.shape
    assert bias.shape == (out_dim,)
    return jnp.concatenate([weight.T, bias.reshape(1, out_dim)], axis=0)


def dummy_forward(x, wb_packed):
    """Pallas equivalent of Dummy.forward (a single nn.Linear(10, 10)).

    `wb_packed` is the (IN+1, OUT) operand from `pack_linear_params`.
    The per-call path is just the pallas_call: no transposes, no reshapes.
    """
    B, IN = x.shape
    IN_p1, OUT = wb_packed.shape
    assert IN_p1 == IN + 1

    vmem = pltpu.MemorySpace.VMEM
    return pl.pallas_call(
        linear_kernel,
        out_shape=jax.ShapeDtypeStruct((B, OUT), x.dtype),
        # No grid: single invocation, whole arrays resident in VMEM.
        in_specs=[
            pl.BlockSpec(memory_space=vmem),  # x
            pl.BlockSpec(memory_space=vmem),  # packed [W.T ; b]
        ],
        out_specs=pl.BlockSpec(memory_space=vmem),
    )(x, wb_packed)


if __name__ == "__main__":
    key = jax.random.PRNGKey(0)
    k_x, k_w, k_b = jax.random.split(key, 3)

    B, IN, OUT = 8, 10, 10  # batch=8, Linear(10, 10)

    # Deterministic parameter init (PyTorch Linear default: U(-1/sqrt(IN), 1/sqrt(IN)))
    bound = 1.0 / (IN ** 0.5)
    weight = jax.random.uniform(k_w, (OUT, IN), jnp.float32, -bound, bound)
    bias = jax.random.uniform(k_b, (OUT,), jnp.float32, -bound, bound)

    x = jax.random.normal(k_x, (B, IN), jnp.float32)

    # Init-time packing (hoisted out of the forward path).
    wb_packed = jax.block_until_ready(pack_linear_params(weight, bias))

    y = dummy_forward(x, wb_packed)
    y = jax.block_until_ready(y)

    # Reference check in plain JAX (PyTorch nn.Linear semantics)
    y_ref = x @ weight.T + bias
    assert y.shape == (B, OUT)
    assert jnp.allclose(y, y_ref, atol=1e-5, rtol=1e-5)

    print("KERNEL_OK")
</pallas_src>

<mosaic_0001>
module attributes {stable_mosaic.version = 11 : i64} {
  func.func @linear_kernel(%arg0: memref<8x10xf32, #tpu.memory_space<vmem>>, %arg1: memref<11x10xf32, #tpu.memory_space<vmem>>, %arg2: memref<8x10xf32, #tpu.memory_space<vmem>>) attributes {dimension_semantics = [], scalar_prefetch = 0 : i64, scratch_operands = 0 : i64, tpu.core_type = #tpu.core_type<tc>} {
    %c0 = arith.constant 0 : index
    %c0_0 = arith.constant 0 : index
    %0 = vector.load %arg1[%c0, %c0_0] : memref<11x10xf32, #tpu.memory_space<vmem>>, vector<11x10xf32>
    %1 = vector.extract_strided_slice %0 {offsets = [0, 0], sizes = [10, 10], strides = [1, 1]} : vector<11x10xf32> to vector<10x10xf32>
    %2 = vector.extract_strided_slice %0 {offsets = [10, 0], sizes = [1, 10], strides = [1, 1]} : vector<11x10xf32> to vector<1x10xf32>
    %c0_1 = arith.constant 0 : index
    %c0_2 = arith.constant 0 : index
    %3 = vector.load %arg0[%c0_1, %c0_2] : memref<8x10xf32, #tpu.memory_space<vmem>>, vector<8x10xf32>
    %cst = arith.constant dense<0.000000e+00> : vector<8x10xf32>
    %4 = tpu.matmul %3, %1, %cst {dimension_numbers = #tpu.dot_dimension_numbers<[1], [0], [0], [1], [0, 0, 1, 1], [], []>} : vector<8x10xf32>, vector<10x10xf32>, vector<8x10xf32> -> vector<8x10xf32>
    %5 = vector.broadcast %2 : vector<1x10xf32> to vector<8x10xf32>
    %6 = arith.addf %4, %5 : vector<8x10xf32>
    %c0_3 = arith.constant 0 : index
    %c0_4 = arith.constant 0 : index
    %7 = vector.load %arg2[%c0_3, %c0_4] : memref<8x10xf32, #tpu.memory_space<vmem>>, vector<8x10xf32>
    tpu.vector_store %arg2[%c0_3, %c0_4], %6 {strides = array<i32>} : memref<8x10xf32, #tpu.memory_space<vmem>>, vector<8x10xf32>,
    return
  }
}

</mosaic_0001>

<llo_original>
// kernel: tpu_custom_call.1
$region0: #{tpu_custom_call.1}
  #allocation0 [shape = 'u32[]', space=smem, size = 0x4, offset = 0x4, fixed_abs, tag = 'smem constant byte address 0x4 - core index']
  #allocation1 [shape = 'u32[144,128]{1,0:T(1,128)}', space=vmem, size = 0x12000, scoped, tag = 'internal scratch']
  %s0 = inlined_call_operand.hbm [shape: f32[8,10], index: 0, kind: input, shape index: {}]
  %s1 = inlined_call_operand.hbm [shape: f32[11,10], index: 1, kind: input, shape index: {}]
  %s2 = inlined_call_operand.hbm [shape: f32[8,10], index: 2, kind: output, shape index: {}]
  %s3 = sld [smem:[#allocation0]]
  $region26: #{tpu_custom_call.1} parent=0
    _
  %s5 = ssub.s32 1, %s3
  %s6 = scalar_select 0, %s5, %s3
  $region1: #{tpu_custom_call.1} parent=0
    #allocation2 [shape = 'u8[4096]{0}', space=vmem, size = 0x1000, scoped, tag = 'input window, operand 0, single buffered']
    #allocation3 [shape = 's32[1]{0}', space=sflag, size = 0x4, scoped, tag = 'scoped memory for tpu_custom_call.1']
    #allocation4 [shape = 's32[1]{0}', space=sflag, size = 0x4, scoped, tag = 'scoped memory for tpu_custom_call.1']
    #allocation5 [shape = 'u8[8192]{0}', space=vmem, size = 0x2000, scoped, tag = 'input window, operand 1, single buffered']
    #allocation6 [shape = 's32[1]{0}', space=sflag, size = 0x4, scoped, tag = 'scoped memory for tpu_custom_call.1']
    #allocation7 [shape = 'u8[4096]{0}', space=vmem, size = 0x1000, scoped, tag = 'output window, operand 0, single buffered']
    %7 = vsyncpa [#allocation3], 0
    %8 = vsyncpa [#allocation6], 0
    %9 = vsyncpa [#allocation4], 0
    // Predicated region
    $region2: #{tpu_custom_call.1} parent=1 // pred_check
      _
    $region3: #{tpu_custom_call.1} parent=1 // pred_check_branch
      %11 = sbr.rel (0) target = $region5
    $region4: #{tpu_custom_call.1} parent=1 // pred_region
      %s13 = ssub.s32 128, 128
      %14 = vsyncadd [#allocation3], %s13
      %s16 = sshll.u32 [#allocation2], 4
      %s17 = int_to_ptr.vmem [resolvable:$true] %s16
      %19 = dma.hbm_to_vmem [thread:$0]  %s0, 128, %s17, [#allocation3]
    $region5: #{tpu_custom_call.1} parent=1 // pred_fallthru
      _
    // Predicated region
    $region6: #{tpu_custom_call.1} parent=1 // pred_check
      _
    $region7: #{tpu_custom_call.1} parent=1 // pred_check_branch
      %21 = sbr.rel (0) target = $region9
    $region8: #{tpu_custom_call.1} parent=1 // pred_region
      %s23 = ssub.s32 256, 256
      %24 = vsyncadd [#allocation6], %s23
      %s25 = sshll.u32 [#allocation5], 4
      %s26 = int_to_ptr.vmem [resolvable:$true] %s25
      %31 = dma.hbm_to_vmem [thread:$0]  %s1, 256, %s26, [#allocation6], 128, 128, 8
    $region9: #{tpu_custom_call.1} parent=1 // pred_fallthru
      _
    // Predicated region
    $region10: #{tpu_custom_call.1} parent=1 // pred_check
      _
    $region11: #{tpu_custom_call.1} parent=1 // pred_check_branch
      %33 = sbr.rel (0) target = $region13
    $region12: #{tpu_custom_call.1} parent=1 // pred_region
      %34 = dma.done [#allocation3], 128
    $region13: #{tpu_custom_call.1} parent=1 // pred_fallthru
      _
    // Predicated region
    $region14: #{tpu_custom_call.1} parent=1 // pred_check
      _
    $region15: #{tpu_custom_call.1} parent=1 // pred_check_branch
      %36 = sbr.rel (0) target = $region17
    $region16: #{tpu_custom_call.1} parent=1 // pred_region
      %37 = dma.done [#allocation6], 256
    $region17: #{tpu_custom_call.1} parent=1 // pred_fallthru
      _
    %v38 = vld [vmem:[#allocation5] sm:$0xff]
    %v39 = vld [vmem:[#allocation5 + $0x8] sm:$0x7]
    %v40 = vld [vmem:[#allocation2] sm:$0xff]
    %v41 = vlaneseq
    %v42 = vshrl.u32 %v41, 7
    %v43 = vsub.s32 2, %v42
    %v44 = vrot.slane %v39, %v43
    %vm45 = vcmask 80896
    %v47 = vsel %vm45, %v40, 0
    %vm49 = vcmask 1041408
    %v51 = vsel %vm49, %v39, 0
    %53 = vmatprep.subr.mxu0 0.0
    %54 = vmatpush1.msra.mxu0 %v38
    %55 = vmatprep.subr.mxu0 0.0
    %56 = vmatpush1.msra.mxu0 %v51
    %57 = vmatprep.subr.mxu0 0.0
    %58 = vmatpush1.msra.mxu0 0.0
    %59 = vmatprep.subr.mxu0 0.0
    %60 = vmatpush1.msra.mxu0 0.0
    %61 = vmatprep.subr.mxu0 0.0
    %62 = vmatpush1.msra.mxu0 0.0
    %63 = vmatprep.subr.mxu0 0.0
    %64 = vmatpush1.msra.mxu0 0.0
    %65 = vmatprep.subr.mxu0 0.0
    %66 = vmatpush1.msra.mxu0 0.0
    %67 = vmatprep.subr.mxu0 0.0
    %68 = vmatpush1.msra.mxu0 0.0
    %69 = vmatprep.subr.mxu0 0.0
    %70 = vmatpush1.msra.mxu0 0.0
    %71 = vmatprep.subr.mxu0 0.0
    %72 = vmatpush1.msra.mxu0 0.0
    %73 = vmatprep.subr.mxu0 0.0
    %74 = vmatpush1.msra.mxu0 0.0
    %75 = vmatprep.subr.mxu0 0.0
    %76 = vmatpush1.msra.mxu0 0.0
    %77 = vmatprep.subr.mxu0 0.0
    %78 = vmatpush1.msra.mxu0 0.0
    %79 = vmatprep.subr.mxu0 0.0
    %80 = vmatpush1.msra.mxu0 0.0
    %81 = vmatprep.subr.mxu0 0.0
    %82 = vmatpush1.msra.mxu0 0.0
    %83 = vmatprep.subr.mxu0 0.0
    %84 = vmatpush1.msra.mxu0 0.0
    %85 = vmatprep.subr.mxu0 0.0
    %86 = vmatpush1.msra.mxu0 0.0
    %87 = vmatprep.subr.mxu0 0.0
    %88 = vmatpush1.msra.mxu0 0.0
    %89 = vmatprep.subr.mxu0 0.0
    %90 = vmatpush1.msra.mxu0 0.0
    %91 = vmatprep.subr.mxu0 0.0
    %92 = vmatpush1.msra.mxu0 0.0
    %93 = vmatprep.subr.mxu0 0.0
    %94 = vmatpush1.msra.mxu0 0.0
    %95 = vmatprep.subr.mxu0 0.0
    %96 = vmatpush1.msra.mxu0 0.0
    %97 = vmatprep.subr.mxu0 0.0
    %98 = vmatpush1.msra.mxu0 0.0
    %99 = vmatprep.subr.mxu0 0.0
    %100 = vmatpush1.msra.mxu0 0.0
    %101 = vmatprep.subr.mxu0 0.0
    %102 = vmatpush1.msra.mxu0 0.0
    %103 = vmatprep.subr.mxu0 0.0
    %104 = vmatpush1.msra.mxu0 0.0
    %105 = vmatprep.subr.mxu0 0.0
    %106 = vmatpush1.msra.mxu0 0.0
    %107 = vmatprep.subr.mxu0 0.0
    %108 = vmatpush1.msra.mxu0 0.0
    %109 = vmatprep.subr.mxu0 0.0
    %110 = vmatpush1.msra.mxu0 0.0
    %111 = vmatprep.subr.mxu0 0.0
    %112 = vmatpush1.msra.mxu0 0.0
    %113 = vmatprep.subr.mxu0 0.0
    %114 = vmatpush1.msra.mxu0 0.0
    %115 = vmatprep.subr.mxu0 0.0
    %116 = vmatpush1.msra.mxu0 0.0
    %117 = vmatprep.mubr.f32.mxu0 0.0
    %118 = vmatmul.mubr.f32.gmra.mrb[0].mxu0 %v47
    %v119 = vpop.f32.mrb[0].mxu0
    %v120 = vadd.f32 %v44, %v119
    %v121 = vpop.f32.mrb[0].mxu0
    %122 = vdwg.mxu0
    %123 = vst.msk [vmem:[#allocation7] sm:$0xff] %vm45, %v120
    // Predicated region
    $region18: #{tpu_custom_call.1} parent=1 // pred_check
      _
    $region19: #{tpu_custom_call.1} parent=1 // pred_check_branch
      %125 = sbr.rel (0) target = $region21
    $region20: #{tpu_custom_call.1} parent=1 // pred_region
      %s127 = ssub.s32 128, 128
      %128 = vsyncadd [#allocation4], %s127
      %s130 = sshll.u32 [#allocation7], 4
      %s131 = int_to_ptr.vmem [resolvable:$true] %s130
      %133 = dma.vmem_to_hbm [thread:$0]  %s131, 128, %s2, [#allocation4]
    $region21: #{tpu_custom_call.1} parent=1 // pred_fallthru
      _
    // Predicated region
    $region22: #{tpu_custom_call.1} parent=1 // pred_check
      _
    $region23: #{tpu_custom_call.1} parent=1 // pred_check_branch
      %135 = sbr.rel (0) target = $region25
    $region24: #{tpu_custom_call.1} parent=1 // pred_region
      %136 = dma.done [#allocation4], 128
    $region25: #{tpu_custom_call.1} parent=1 // pred_fallthru
      _
    %137 = vsyncpa [#allocation3], 1
    %138 = vsyncpa [#allocation6], 1
    %139 = vsyncpa [#allocation4], 1

</llo_original>
